<compile_context>
chip_gen: v7x
topology: tpu7x:2x2x1
jax: 0.10.0
libtpu: 0.0.40
codegen_flags: <defaults>
</compile_context>

<pallas_src>
import jax
import jax.numpy as jnp
from jax.experimental import pallas as pl
from jax.experimental.pallas import tpu as pltpu


_TARGET_BLOCK_BYTES = 2 * 1024 * 1024  # ~2 MiB block; in+out double-buffered = 8 MiB


def _round_up(v, m):
    return ((v + m - 1) // m) * m


def _pick_lanes(total):
    """Largest lane width (multiple of 128) that exactly divides the element count."""
    for lanes in (512, 384, 256, 128):
        if total % lanes == 0:
            return lanes
    return 0


def _pick_tile_rows(rows, lanes, itemsize):
    """Row-tile: ~2 MiB blocks, sublane-granule aligned, and >=4 grid steps when possible."""
    granule = max(8, 32 // itemsize)                    # 8 f32, 16 bf16, 32 int8/fp8
    max_rows = max(granule, _TARGET_BLOCK_BYTES // (lanes * itemsize))
    quarter = _round_up(pl.cdiv(rows, 4), granule)       # aim for >=4 steps (v7x megacore)
    tile = min(max_rows, quarter)
    if tile >= rows:
        return rows                                      # single full block (always legal)
    return max(granule, (tile // granule) * granule)


def _mish_kernel(x_ref, o_ref):
    x = x_ref[...].astype(jnp.float32)
    # tanh(softplus(x)) = (s^2-1)/(s^2+1), s = 1+e^x.  Cancellation-free form:
    #   num = e*(e+2) = s^2-1,  den = num+2 = s^2+1   (exact even for x << 0)
    e = jnp.exp(jnp.minimum(x, 20.0))        # clamp keeps e^2 finite in f32
    num = e * (e + 2.0)
    den = num + 2.0
    inv = pl.reciprocal(den, approx=True)    # EUP vrcp (separate VLIW slot)
    inv = inv * (2.0 - den * inv)            # one Newton step on the VPU -> ~f32 accuracy
    t = num * inv
    # For x > 20, softplus(x) ~= x and tanh -> 1 in f32 -> passthrough x
    # (also keeps any masked-tail garbage from propagating NaN/Inf).
    y = jnp.where(x > 20.0, x, x * t)
    o_ref[...] = y.astype(o_ref.dtype)


def _mish_impl(x):
    orig_shape = x.shape
    total = x.size
    itemsize = x.dtype.itemsize
    flat = x.reshape(-1)

    lanes = _pick_lanes(total)
    sliced = False
    if lanes == 0:
        # Rare ragged-size fallback: minimal tail pad to one 128-lane granule.
        lanes = 128
        padded_total = _round_up(total, lanes)
        flat = jnp.pad(flat, (0, padded_total - total))
        sliced = True

    rows = flat.size // lanes
    x2d = flat.reshape(rows, lanes)           # free bitcast when no fallback pad
    tile_rows = _pick_tile_rows(rows, lanes, itemsize)
    grid = (pl.cdiv(rows, tile_rows),)        # partial last block masked by Pallas
    block = (tile_rows, lanes)

    out2d = pl.pallas_call(
        _mish_kernel,
        out_shape=jax.ShapeDtypeStruct(x2d.shape, x.dtype),
        grid_spec=pltpu.PrefetchScalarGridSpec(
            num_scalar_prefetch=0,
            grid=grid,
            in_specs=[pl.BlockSpec(block, lambda i: (i, 0))],
            out_specs=pl.BlockSpec(block, lambda i: (i, 0)),
        ),
        input_output_aliases={0: 0},
        compiler_params=pltpu.CompilerParams(
            dimension_semantics=("parallel",),
            vmem_limit_bytes=32 * 1024 * 1024,   # explicit; safe on v5e/v6e/v7x
        ),
    )(x2d)

    if sliced:
        return out2d.reshape(-1)[:total].reshape(orig_shape)
    return out2d.reshape(orig_shape)


# jit so the reshape/bitcast plumbing fuses with the pallas_call (no eager copies).
mish = jax.jit(_mish_impl)


if __name__ == "__main__":
    key = jax.random.PRNGKey(0)
    x = jax.random.normal(key, (2, 4, 16, 16), dtype=jnp.float32)

    y = mish(x)
    jax.block_until_ready(y)

    # reference check in plain JAX
    y_ref = x * jnp.tanh(jax.nn.softplus(x))
    assert y.shape == x.shape and y.dtype == x.dtype
    assert jnp.allclose(y, y_ref, atol=1e-4, rtol=1e-4)

    # multi-step grid (4 blocks), no padding, large magnitudes (x > 20 passthrough path)
    x2 = 10.0 * jax.random.normal(jax.random.PRNGKey(1), (3, 8, 128, 96), dtype=jnp.float32)
    y2 = mish(x2)
    jax.block_until_ready(y2)
    y2_ref = x2 * jnp.tanh(jax.nn.softplus(x2))
    assert jnp.allclose(y2, y2_ref, atol=1e-4, rtol=1e-4)

    # ragged element count (210, not a multiple of 128) exercises the minimal-pad fallback
    x3 = jax.random.normal(jax.random.PRNGKey(2), (2, 3, 7, 5), dtype=jnp.float32)
    y3 = mish(x3)
    jax.block_until_ready(y3)
    y3_ref = x3 * jnp.tanh(jax.nn.softplus(x3))
    assert jnp.allclose(y3, y3_ref, atol=1e-4, rtol=1e-4)

    print("KERNEL_OK")
</pallas_src>

<mosaic_0001>
module attributes {stable_mosaic.version = 11 : i64} {
  func.func @_mish_kernel(%arg0: i32, %arg1: memref<4x512xf32, #tpu.memory_space<vmem>>, %arg2: memref<4x512xf32, #tpu.memory_space<vmem>>) attributes {dimension_semantics = [#tpu.dimension_semantics<parallel>], iteration_bounds = array<i64: 1>, scalar_prefetch = 0 : i64, scratch_operands = 0 : i64, tpu.core_type = #tpu.core_type<tc>, window_params = [{transform_indices = @transform_0, window_bounds = array<i64: 4, 512>}, {transform_indices = @transform_1, window_bounds = array<i64: 4, 512>}]} {
    %c0 = arith.constant 0 : index
    %c0_0 = arith.constant 0 : index
    %0 = vector.load %arg1[%c0, %c0_0] : memref<4x512xf32, #tpu.memory_space<vmem>>, vector<4x512xf32>
    %cst = arith.constant 2.000000e+01 : f32
    %1 = vector.broadcast %cst : f32 to vector<4x512xf32>
    %2 = arith.minimumf %0, %1 : vector<4x512xf32>
    %3 = math.exp %2 : vector<4x512xf32>
    %cst_1 = arith.constant 2.000000e+00 : f32
    %4 = vector.broadcast %cst_1 : f32 to vector<4x512xf32>
    %5 = arith.addf %3, %4 : vector<4x512xf32>
    %6 = arith.mulf %3, %5 : vector<4x512xf32>
    %cst_2 = arith.constant 2.000000e+00 : f32
    %7 = vector.broadcast %cst_2 : f32 to vector<4x512xf32>
    %8 = arith.addf %6, %7 : vector<4x512xf32>
    %9 = tpu.reciprocal %8 {approx = true} : vector<4x512xf32> -> vector<4x512xf32>
    %10 = arith.mulf %8, %9 : vector<4x512xf32>
    %cst_3 = arith.constant 2.000000e+00 : f32
    %11 = vector.broadcast %cst_3 : f32 to vector<4x512xf32>
    %12 = arith.subf %11, %10 : vector<4x512xf32>
    %13 = arith.mulf %9, %12 : vector<4x512xf32>
    %14 = arith.mulf %6, %13 : vector<4x512xf32>
    %cst_4 = arith.constant 2.000000e+01 : f32
    %15 = vector.broadcast %cst_4 : f32 to vector<4x512xf32>
    %16 = arith.cmpf ogt, %0, %15 : vector<4x512xf32>
    %17 = arith.mulf %0, %14 : vector<4x512xf32>
    %18 = arith.select %16, %0, %17 : vector<4x512xi1>, vector<4x512xf32>
    %c0_5 = arith.constant 0 : index
    %c0_6 = arith.constant 0 : index
    %19 = vector.load %arg2[%c0_5, %c0_6] : memref<4x512xf32, #tpu.memory_space<vmem>>, vector<4x512xf32>
    tpu.vector_store %arg2[%c0_5, %c0_6], %18 {strides = array<i32>} : memref<4x512xf32, #tpu.memory_space<vmem>>, vector<4x512xf32>,
    return
  }
  func.func @transform_0(%arg0: i32) -> (i32, i32) {
    %c0_i32 = arith.constant 0 : i32
    %c0_i32_0 = arith.constant 0 : i32
    return %arg0, %c0_i32 : i32, i32
  }
  func.func @transform_1(%arg0: i32) -> (i32, i32) {
    %c0_i32 = arith.constant 0 : i32
    %c0_i32_0 = arith.constant 0 : i32
    return %arg0, %c0_i32 : i32, i32
  }
}

</mosaic_0001>

<llo_original>
// kernel: _mish_impl.1
$region0: #{_mish_impl.1}
  #allocation0 [shape = 'u32[]', space=smem, size = 0x4, offset = 0x4, fixed_abs, tag = 'smem constant byte address 0x4 - core index']
  #allocation1 [shape = 'u32[144,128]{1,0:T(1,128)}', space=vmem, size = 0x12000, scoped, tag = 'internal scratch']
  %s0 = inlined_call_operand.vmem [shape: f32[4,512], index: 0, kind: input, shape index: {}, may-alias: {0,1}]
  %s1 = inlined_call_operand.vmem [shape: f32[4,512], index: 1, kind: output, shape index: {}, may-alias: {0,1}]
  %s2 = sld [smem:[#allocation0]]
  $region14: #{_mish_impl.1} parent=0
    _
  %s4 = ssub.s32 1, %s2
  %s5 = scalar_select 0, %s4, %s2
  // Predicated region
  $region2: #{_mish_impl.1} parent=0 // pred_check
    _
  $region3: #{_mish_impl.1} parent=0 // pred_check_branch
    %7 = sbr.rel (0) target = $region5
  $region4: #{_mish_impl.1} parent=0 // pred_region
    _
  $region5: #{_mish_impl.1} parent=0 // pred_fallthru
    _
  %v8 = vld [vmem:[%s0] sm:$0xff]
  %v9 = vld [vmem:[%s0 + $0x8] sm:$0xff]
  %v10 = vmin.f32 %v8, 20.0
  %v11 = vmin.f32 %v9, 20.0
  %v12 = vmul.f32 %v10, 1.442695
  %v13 = vpow.pop %v12
  %v14 = vmul.f32 %v11, 1.442695
  %v15 = vpow.pop %v14
  %v16 = vadd.f32 %v13, 2.0
  %v17 = vadd.f32 %v15, 2.0
  %v18 = vmul.f32 %v13, %v16
  %v19 = vmul.f32 %v15, %v17
  %v20 = vadd.f32 %v18, 2.0
  %v21 = vadd.f32 %v19, 2.0
  %v22 = vrcp.pop %v20
  %v23 = vrcp.pop %v21
  %v24 = vmul.f32 %v20, %v22
  %v25 = vmul.f32 %v21, %v23
  %v26 = vsub.f32 2.0, %v24
  %v27 = vsub.f32 2.0, %v25
  %v28 = vmul.f32 %v22, %v26
  %v29 = vmul.f32 %v23, %v27
  %v30 = vmul.f32 %v18, %v28
  %v31 = vmul.f32 %v19, %v29
  %vm32 = vcmp.gt.f32.partialorder %v8, 20.0
  %vm33 = vcmp.gt.f32.partialorder %v9, 20.0
  %v34 = vmul.f32 %v8, %v30
  %v35 = vmul.f32 %v9, %v31
  %v36 = vsel %vm32, %v8, %v34
  %v37 = vsel %vm33, %v9, %v35
  %38 = vst [vmem:[%s1] sm:$0xff] %v36
  %39 = vst [vmem:[%s1 + $0x8] sm:$0xff] %v37
  // Predicated region
  $region6: #{_mish_impl.1} parent=0 // pred_check
    _
  $region7: #{_mish_impl.1} parent=0 // pred_check_branch
    %41 = sbr.rel (0) target = $region9
  $region8: #{_mish_impl.1} parent=0 // pred_region
    _
  $region9: #{_mish_impl.1} parent=0 // pred_fallthru
    _
  // Predicated region
  $region10: #{_mish_impl.1} parent=0 // pred_check
    _
  $region11: #{_mish_impl.1} parent=0 // pred_check_branch
    %43 = sbr.rel (0) target = $region13
  $region12: #{_mish_impl.1} parent=0 // pred_region
    _
  $region13: #{_mish_impl.1} parent=0 // pred_fallthru
    _

</llo_original>
